<compile_context>
chip_gen: v5e
topology: v5e:2x2
jax: 0.10.0
libtpu: 0.0.40
codegen_flags: <defaults>
</compile_context>

<pallas_src>
import functools
import math

import jax
import jax.numpy as jnp
from jax.experimental import pallas as pl
from jax.experimental.pallas import tpu as pltpu


def _gelu_exact(x):
    # PyTorch nn.GELU default is the exact erf-based GELU.
    return 0.5 * x * (1.0 + jax.lax.erf(x * (1.0 / math.sqrt(2.0))))


def _regressor_kernel(x_ref,
                      w1_ref, b1_ref,
                      w2_ref, b2_ref,
                      w3_ref, b3_ref,
                      o_ref,
                      *, matmul_dtype):
    # Layer 1: Linear + GELU   (MXU matmul, f32 accumulate; GELU in f32 on VPU/EUP)
    x = x_ref[...].astype(matmul_dtype)
    h = jnp.dot(x, w1_ref[...].astype(matmul_dtype),
                preferred_element_type=jnp.float32)
    h = _gelu_exact(h + b1_ref[...])
    # Layer 2: Linear + GELU
    h = jnp.dot(h.astype(matmul_dtype), w2_ref[...].astype(matmul_dtype),
                preferred_element_type=jnp.float32)
    h = _gelu_exact(h + b2_ref[...])
    # Output head: Linear(.., 3) + ReLU
    h = jnp.dot(h.astype(matmul_dtype), w3_ref[...].astype(matmul_dtype),
                preferred_element_type=jnp.float32)
    h = jnp.maximum(h + b3_ref[...], 0.0)
    o_ref[...] = h.astype(o_ref.dtype)


def _round_up(n, m):
    return ((n + m - 1) // m) * m


def regressor_forward(x, params, *, tb=None, matmul_dtype=jnp.float32):
    """Fused MLP forward.  x: [B, F] float32, params: dict of weights/biases.

    tb: batch tile (rows per grid step).  Defaults to min(2048, round_up(B, 8)):
        multiple of 8 sublanes, large enough for MXU M-occupancy and HBM streaming,
        small enough (< ~1.5 MiB of tiles + intermediates) for any TPU generation's
        VMEM even with double-buffering.
    matmul_dtype: jnp.float32 (exact) or jnp.bfloat16 (faster MXU on v6e/v7x,
        accumulation stays f32).
    """
    w1, b1, w2, b2, w3, b3 = (params["w1"], params["b1"],
                              params["w2"], params["b2"],
                              params["w3"], params["b3"])
    B, F = x.shape
    H1 = w1.shape[1]
    H2 = w2.shape[1]
    OUT = w3.shape[1]

    if tb is None:
        tb = min(2048, _round_up(B, 8))
    tb = max(8, _round_up(min(tb, _round_up(B, 8)), 8))
    grid = (pl.cdiv(B, tb),)

    # x / out are tiled over the batch; weights & biases use constant index maps so
    # they are DMA'd once and stay VMEM-resident across all grid steps.
    x_spec = pl.BlockSpec((tb, F), lambda i: (i, 0))
    out_spec = pl.BlockSpec((tb, OUT), lambda i: (i, 0))

    def _resident(arr):
        return pl.BlockSpec(arr.shape, lambda i: (0, 0))

    flops = 2 * B * (F * H1 + H1 * H2 + H2 * OUT)
    transcendentals = B * (H1 + H2)          # one erf per GELU element
    bytes_accessed = (x.size * x.dtype.itemsize
                      + B * OUT * 4
                      + sum(int(p.size) * p.dtype.itemsize for p in
                            (w1, b1, w2, b2, w3, b3)))

    kernel = functools.partial(_regressor_kernel, matmul_dtype=matmul_dtype)

    return pl.pallas_call(
        kernel,
        out_shape=jax.ShapeDtypeStruct((B, OUT), jnp.float32),
        grid=grid,
        in_specs=[x_spec,
                  _resident(w1), _resident(b1),
                  _resident(w2), _resident(b2),
                  _resident(w3), _resident(b3)],
        out_specs=out_spec,
        compiler_params=pltpu.CompilerParams(
            dimension_semantics=("parallel",)),   # use both TCs on v7x; no-op on v5e/v6e
        cost_estimate=pl.CostEstimate(flops=flops,
                                      transcendentals=transcendentals,
                                      bytes_accessed=bytes_accessed),
    )(x, w1, b1, w2, b2, w3, b3)


def init_params(key, feature_dim, inner_layers):
    """Deterministic init mimicking nn.Linear's U(-1/sqrt(fan_in), 1/sqrt(fan_in))."""
    dims = [feature_dim] + list(inner_layers) + [3]
    params = {}
    keys = jax.random.split(key, 2 * (len(dims) - 1))
    for i in range(len(dims) - 1):
        fan_in, fan_out = dims[i], dims[i + 1]
        bound = 1.0 / math.sqrt(fan_in)
        w = jax.random.uniform(keys[2 * i], (fan_in, fan_out),
                               minval=-bound, maxval=bound, dtype=jnp.float32)
        b = jax.random.uniform(keys[2 * i + 1], (1, fan_out),
                               minval=-bound, maxval=bound, dtype=jnp.float32)
        params[f"w{i + 1}"] = w
        params[f"b{i + 1}"] = b
    return params


def regressor_reference(x, params):
    """Pure-JAX reference of the same forward pass."""
    h = _gelu_exact(x @ params["w1"] + params["b1"])
    h = _gelu_exact(h @ params["w2"] + params["b2"])
    return jnp.maximum(h @ params["w3"] + params["b3"], 0.0)


if __name__ == "__main__":
    # Small shapes consistent with Regressor(feature_dim=32, inner_layers=[64, 32]).
    # NOTE: dropout is defined in __init__ but never applied in forward(); nothing to do.
    FEATURE_DIM = 32
    INNER_LAYERS = [64, 32]

    key = jax.random.PRNGKey(0)
    k_x, k_p, k_x2 = jax.random.split(key, 3)
    params = init_params(k_p, FEATURE_DIM, INNER_LAYERS)

    # --- exact f32 path, single grid step ---
    B = 8
    x = jax.random.normal(k_x, (B, FEATURE_DIM), dtype=jnp.float32)
    out = jax.block_until_ready(jax.jit(regressor_forward)(x, params))
    ref = regressor_reference(x, params)
    assert out.shape == (B, 3), out.shape
    assert jnp.allclose(out, ref, atol=1e-5, rtol=1e-5), "f32 mismatch vs reference"

    # --- multi-step grid with a partial final tile (exercises batch pipelining/masking) ---
    B2 = 100
    x2 = jax.random.normal(k_x2, (B2, FEATURE_DIM), dtype=jnp.float32)
    fwd_tiled = jax.jit(functools.partial(regressor_forward, tb=32))
    out2 = jax.block_until_ready(fwd_tiled(x2, params))
    ref2 = regressor_reference(x2, params)
    assert out2.shape == (B2, 3), out2.shape
    assert jnp.allclose(out2, ref2, atol=1e-5, rtol=1e-5), "tiled f32 mismatch vs reference"

    # --- bf16 MXU-input path (v6e/v7x throughput option), looser tolerance ---
    fwd_bf16 = jax.jit(functools.partial(regressor_forward, matmul_dtype=jnp.bfloat16))
    out_bf16 = jax.block_until_ready(fwd_bf16(x2, params))
    assert out_bf16.shape == (B2, 3), out_bf16.shape
    assert jnp.allclose(out_bf16, ref2, atol=3e-2, rtol=3e-2), "bf16 drift too large"

    print("KERNEL_OK")
</pallas_src>

<mosaic_0001>
module attributes {stable_mosaic.version = 11 : i64} {
  func.func @_regressor_kernel(%arg0: i32, %arg1: memref<8x32xf32, #tpu.memory_space<vmem>>, %arg2: memref<32x64xf32, #tpu.memory_space<vmem>>, %arg3: memref<1x64xf32, #tpu.memory_space<vmem>>, %arg4: memref<64x32xf32, #tpu.memory_space<vmem>>, %arg5: memref<1x32xf32, #tpu.memory_space<vmem>>, %arg6: memref<32x3xf32, #tpu.memory_space<vmem>>, %arg7: memref<1x3xf32, #tpu.memory_space<vmem>>, %arg8: memref<8x3xf32, #tpu.memory_space<vmem>>) attributes {dimension_semantics = [#tpu.dimension_semantics<parallel>], iteration_bounds = array<i64: 1>, scalar_prefetch = 0 : i64, scratch_operands = 0 : i64, tpu.core_type = #tpu.core_type<tc>, window_params = [{transform_indices = @transform_0, window_bounds = array<i64: 8, 32>}, {pipeline_mode = #tpu.pipeline_mode<synchronous>, transform_indices = @transform_1, window_bounds = array<i64: 32, 64>}, {pipeline_mode = #tpu.pipeline_mode<synchronous>, transform_indices = @transform_2, window_bounds = array<i64: 1, 64>}, {pipeline_mode = #tpu.pipeline_mode<synchronous>, transform_indices = @transform_3, window_bounds = array<i64: 64, 32>}, {pipeline_mode = #tpu.pipeline_mode<synchronous>, transform_indices = @transform_4, window_bounds = array<i64: 1, 32>}, {pipeline_mode = #tpu.pipeline_mode<synchronous>, transform_indices = @transform_5, window_bounds = array<i64: 32, 3>}, {pipeline_mode = #tpu.pipeline_mode<synchronous>, transform_indices = @transform_6, window_bounds = array<i64: 1, 3>}, {transform_indices = @transform_7, window_bounds = array<i64: 8, 3>}]} {
    %c0 = arith.constant 0 : index
    %c0_0 = arith.constant 0 : index
    %0 = vector.load %arg1[%c0, %c0_0] : memref<8x32xf32, #tpu.memory_space<vmem>>, vector<8x32xf32>
    %c0_1 = arith.constant 0 : index
    %c0_2 = arith.constant 0 : index
    %1 = vector.load %arg2[%c0_1, %c0_2] : memref<32x64xf32, #tpu.memory_space<vmem>>, vector<32x64xf32>
    %cst = arith.constant dense<0.000000e+00> : vector<8x64xf32>
    %2 = tpu.matmul %0, %1, %cst {dimension_numbers = #tpu.dot_dimension_numbers<[1], [0], [0], [1], [0, 0, 1, 1], [], []>} : vector<8x32xf32>, vector<32x64xf32>, vector<8x64xf32> -> vector<8x64xf32>
    %c0_3 = arith.constant 0 : index
    %c0_4 = arith.constant 0 : index
    %3 = vector.load %arg3[%c0_3, %c0_4] : memref<1x64xf32, #tpu.memory_space<vmem>>, vector<1x64xf32>
    %4 = vector.broadcast %3 : vector<1x64xf32> to vector<8x64xf32>
    %5 = arith.addf %2, %4 : vector<8x64xf32>
    %cst_5 = arith.constant 5.000000e-01 : f32
    %6 = vector.broadcast %cst_5 : f32 to vector<8x64xf32>
    %7 = arith.mulf %6, %5 : vector<8x64xf32>
    %cst_6 = arith.constant 0.707106769 : f32
    %8 = vector.broadcast %cst_6 : f32 to vector<8x64xf32>
    %9 = arith.mulf %5, %8 : vector<8x64xf32>
    %10 = math.erf %9 : vector<8x64xf32>
    %cst_7 = arith.constant 1.000000e+00 : f32
    %11 = vector.broadcast %cst_7 : f32 to vector<8x64xf32>
    %12 = arith.addf %11, %10 : vector<8x64xf32>
    %13 = arith.mulf %7, %12 : vector<8x64xf32>
    %c0_8 = arith.constant 0 : index
    %c0_9 = arith.constant 0 : index
    %14 = vector.load %arg4[%c0_8, %c0_9] : memref<64x32xf32, #tpu.memory_space<vmem>>, vector<64x32xf32>
    %cst_10 = arith.constant dense<0.000000e+00> : vector<8x32xf32>
    %15 = tpu.matmul %13, %14, %cst_10 {dimension_numbers = #tpu.dot_dimension_numbers<[1], [0], [0], [1], [0, 0, 1, 1], [], []>} : vector<8x64xf32>, vector<64x32xf32>, vector<8x32xf32> -> vector<8x32xf32>
    %c0_11 = arith.constant 0 : index
    %c0_12 = arith.constant 0 : index
    %16 = vector.load %arg5[%c0_11, %c0_12] : memref<1x32xf32, #tpu.memory_space<vmem>>, vector<1x32xf32>
    %17 = vector.broadcast %16 : vector<1x32xf32> to vector<8x32xf32>
    %18 = arith.addf %15, %17 : vector<8x32xf32>
    %cst_13 = arith.constant 5.000000e-01 : f32
    %19 = vector.broadcast %cst_13 : f32 to vector<8x32xf32>
    %20 = arith.mulf %19, %18 : vector<8x32xf32>
    %cst_14 = arith.constant 0.707106769 : f32
    %21 = vector.broadcast %cst_14 : f32 to vector<8x32xf32>
    %22 = arith.mulf %18, %21 : vector<8x32xf32>
    %23 = math.erf %22 : vector<8x32xf32>
    %cst_15 = arith.constant 1.000000e+00 : f32
    %24 = vector.broadcast %cst_15 : f32 to vector<8x32xf32>
    %25 = arith.addf %24, %23 : vector<8x32xf32>
    %26 = arith.mulf %20, %25 : vector<8x32xf32>
    %c0_16 = arith.constant 0 : index
    %c0_17 = arith.constant 0 : index
    %27 = vector.load %arg6[%c0_16, %c0_17] : memref<32x3xf32, #tpu.memory_space<vmem>>, vector<32x3xf32>
    %cst_18 = arith.constant dense<0.000000e+00> : vector<8x3xf32>
    %28 = tpu.matmul %26, %27, %cst_18 {dimension_numbers = #tpu.dot_dimension_numbers<[1], [0], [0], [1], [0, 0, 1, 1], [], []>} : vector<8x32xf32>, vector<32x3xf32>, vector<8x3xf32> -> vector<8x3xf32>
    %c0_19 = arith.constant 0 : index
    %c0_20 = arith.constant 0 : index
    %29 = vector.load %arg7[%c0_19, %c0_20] : memref<1x3xf32, #tpu.memory_space<vmem>>, vector<1x3xf32>
    %30 = vector.broadcast %29 : vector<1x3xf32> to vector<8x3xf32>
    %31 = arith.addf %28, %30 : vector<8x3xf32>
    %cst_21 = arith.constant 0.000000e+00 : f32
    %32 = vector.broadcast %cst_21 : f32 to vector<8x3xf32>
    %33 = arith.maximumf %31, %32 : vector<8x3xf32>
    %c0_22 = arith.constant 0 : index
    %c0_23 = arith.constant 0 : index
    %34 = vector.load %arg8[%c0_22, %c0_23] : memref<8x3xf32, #tpu.memory_space<vmem>>, vector<8x3xf32>
    tpu.vector_store %arg8[%c0_22, %c0_23], %33 {strides = array<i32>} : memref<8x3xf32, #tpu.memory_space<vmem>>, vector<8x3xf32>,
    return
  }
  func.func @transform_0(%arg0: i32) -> (i32, i32) {
    %c0_i32 = arith.constant 0 : i32
    %c0_i32_0 = arith.constant 0 : i32
    return %arg0, %c0_i32 : i32, i32
  }
  func.func @transform_1(%arg0: i32) -> (i32, i32) {
    %c0_i32 = arith.constant 0 : i32
    %c0_i32_0 = arith.constant 0 : i32
    %c0_i32_1 = arith.constant 0 : i32
    return %c0_i32, %c0_i32_0 : i32, i32
  }
  func.func @transform_2(%arg0: i32) -> (i32, i32) {
    %c0_i32 = arith.constant 0 : i32
    %c0_i32_0 = arith.constant 0 : i32
    %c0_i32_1 = arith.constant 0 : i32
    return %c0_i32, %c0_i32_0 : i32, i32
  }
  func.func @transform_3(%arg0: i32) -> (i32, i32) {
    %c0_i32 = arith.constant 0 : i32
    %c0_i32_0 = arith.constant 0 : i32
    %c0_i32_1 = arith.constant 0 : i32
    return %c0_i32, %c0_i32_0 : i32, i32
  }
  func.func @transform_4(%arg0: i32) -> (i32, i32) {
    %c0_i32 = arith.constant 0 : i32
    %c0_i32_0 = arith.constant 0 : i32
    %c0_i32_1 = arith.constant 0 : i32
    return %c0_i32, %c0_i32_0 : i32, i32
  }
  func.func @transform_5(%arg0: i32) -> (i32, i32) {
    %c0_i32 = arith.constant 0 : i32
    %c0_i32_0 = arith.constant 0 : i32
    %c0_i32_1 = arith.constant 0 : i32
    return %c0_i32, %c0_i32_0 : i32, i32
  }
  func.func @transform_6(%arg0: i32) -> (i32, i32) {
    %c0_i32 = arith.constant 0 : i32
    %c0_i32_0 = arith.constant 0 : i32
    %c0_i32_1 = arith.constant 0 : i32
    return %c0_i32, %c0_i32_0 : i32, i32
  }
  func.func @transform_7(%arg0: i32) -> (i32, i32) {
    %c0_i32 = arith.constant 0 : i32
    %c0_i32_0 = arith.constant 0 : i32
    return %arg0, %c0_i32 : i32, i32
  }
}

</mosaic_0001>

<llo_original>
// kernel: regressor_forward.1
$region0: #{regressor_forward.1}
  #allocation0 [shape = 'u32[]', space=smem, size = 0x4, offset = 0x4, fixed_abs, tag = 'smem constant byte address 0x4 - core index']
  #allocation1 [shape = 'u32[72,128]{1,0:T(1,128)}', space=vmem, size = 0x9000, scoped, tag = 'internal scratch']
  %s0 = inlined_call_operand.vmem [shape: f32[8,32], index: 0, kind: input, shape index: {}]
  %s1 = inlined_call_operand.vmem [shape: f32[32,64], index: 1, kind: input, shape index: {}]
  %s2 = inlined_call_operand.vmem [shape: f32[1,64], index: 2, kind: input, shape index: {}]
  %s3 = inlined_call_operand.vmem [shape: f32[64,32], index: 3, kind: input, shape index: {}]
  %s4 = inlined_call_operand.vmem [shape: f32[1,32], index: 4, kind: input, shape index: {}]
  %s5 = inlined_call_operand.vmem [shape: f32[32,3], index: 5, kind: input, shape index: {}]
  %s6 = inlined_call_operand.vmem [shape: f32[1,3], index: 6, kind: input, shape index: {}]
  %s7 = inlined_call_operand.vmem [shape: f32[8,3], index: 7, kind: output, shape index: {}]
  %s8 = sld [smem:[#allocation0]]
  $region38: #{regressor_forward.1} parent=0
    _
  %s10 = ssub.s32 1, %s8
  %s11 = scalar_select 0, %s10, %s8
  // Predicated region
  $region2: #{regressor_forward.1} parent=0 // pred_check
    _
  $region3: #{regressor_forward.1} parent=0 // pred_check_branch
    %13 = sbr.rel (0) target = $region5
  $region4: #{regressor_forward.1} parent=0 // pred_region
    _
  $region5: #{regressor_forward.1} parent=0 // pred_fallthru
    _
  // Predicated region
  $region6: #{regressor_forward.1} parent=0 // pred_check
    _
  $region7: #{regressor_forward.1} parent=0 // pred_check_branch
    %15 = sbr.rel (0) target = $region9
  $region8: #{regressor_forward.1} parent=0 // pred_region
    _
  $region9: #{regressor_forward.1} parent=0 // pred_fallthru
    _
  // Predicated region
  $region10: #{regressor_forward.1} parent=0 // pred_check
    _
  $region11: #{regressor_forward.1} parent=0 // pred_check_branch
    %17 = sbr.rel (0) target = $region13
  $region12: #{regressor_forward.1} parent=0 // pred_region
    _
  $region13: #{regressor_forward.1} parent=0 // pred_fallthru
    _
  // Predicated region
  $region14: #{regressor_forward.1} parent=0 // pred_check
    _
  $region15: #{regressor_forward.1} parent=0 // pred_check_branch
    %19 = sbr.rel (0) target = $region17
  $region16: #{regressor_forward.1} parent=0 // pred_region
    _
  $region17: #{regressor_forward.1} parent=0 // pred_fallthru
    _
  // Predicated region
  $region18: #{regressor_forward.1} parent=0 // pred_check
    _
  $region19: #{regressor_forward.1} parent=0 // pred_check_branch
    %21 = sbr.rel (0) target = $region21
  $region20: #{regressor_forward.1} parent=0 // pred_region
    _
  $region21: #{regressor_forward.1} parent=0 // pred_fallthru
    _
  // Predicated region
  $region22: #{regressor_forward.1} parent=0 // pred_check
    _
  $region23: #{regressor_forward.1} parent=0 // pred_check_branch
    %23 = sbr.rel (0) target = $region25
  $region24: #{regressor_forward.1} parent=0 // pred_region
    _
  $region25: #{regressor_forward.1} parent=0 // pred_fallthru
    _
  // Predicated region
  $region26: #{regressor_forward.1} parent=0 // pred_check
    _
  $region27: #{regressor_forward.1} parent=0 // pred_check_branch
    %25 = sbr.rel (0) target = $region29
  $region28: #{regressor_forward.1} parent=0 // pred_region
    _
  $region29: #{regressor_forward.1} parent=0 // pred_fallthru
    _
  %v26 = vld [vmem:[%s0] sm:$0xff]
  %v27 = vld [vmem:[%s1] sm:$0xff]
  %v28 = vld [vmem:[%s1 + $0x8] sm:$0xff]
  %v29 = vld [vmem:[%s1 + $0x10] sm:$0xff]
  %v30 = vld [vmem:[%s1 + $0x18] sm:$0xff]
  %v31 = vld [vmem:[%s2] sm:$0x1]
  %v33 = vperm.slane %v31, 0
  %vm35 = vcmask 261120
  %v37 = vsel %vm35, %v26, 0
  %39 = vmatpush.msra.mxu0 0.0
  %40 = vmatpush.msra.mxu0 0.0
  %41 = vmatpush.msra.mxu0 0.0
  %42 = vmatpush.msra.mxu0 0.0
  %43 = vmatpush.msra.mxu0 0.0
  %44 = vmatpush.msra.mxu0 0.0
  %45 = vmatpush.msra.mxu0 0.0
  %46 = vmatpush.msra.mxu0 0.0
  %47 = vmatpush.msra.mxu0 0.0
  %48 = vmatpush.msra.mxu0 0.0
  %49 = vmatpush.msra.mxu0 0.0
  %50 = vmatpush.msra.mxu0 0.0
  %51 = vmatpush.msra.mxu0 %v30
  %52 = vmatpush.msra.mxu0 %v29
  %53 = vmatpush.msra.mxu0 %v28
  %54 = vmatpush.msra.mxu0 %v27
  %55 = vmatmul.f32.gmra.mxu0 %v37
  %v56 = vpop.f32.mrf.mxu0
  %v57 = vadd.f32 %v33, %v56
  %58 = vdwg.mxu0
  %v59 = vmul.f32 %v57, 0.5
  %v60 = vmul.f32 %v57, 0.70710677
  %v61 = vmul.f32 %v60, %v60
  %v62 = vmin.f32 16.0, %v61
  %v63 = vmul.f32 %v62, 2.1237322e-06
  %v64 = vadd.f32 %v63, 0.00028619796
  %v65 = vmul.f32 %v62, %v64
  %v66 = vadd.f32 %v65, 0.0036580483
  %v67 = vmul.f32 %v62, %v66
  %v68 = vadd.f32 %v67, 0.05243302
  %v69 = vmul.f32 %v62, %v68
  %v70 = vadd.f32 %v69, 0.18741608
  %v71 = vmul.f32 %v62, %v70
  %v72 = vadd.f32 %v71, 1.1283791
  %v73 = vmul.f32 %v60, %v72
  %v74 = vmul.f32 %v62, 3.8918573e-05
  %v75 = vadd.f32 %v74, 0.001143296
  %v76 = vmul.f32 %v62, %v75
  %v77 = vadd.f32 %v76, 0.014752088
  %v78 = vmul.f32 %v62, %v77
  %v79 = vadd.f32 %v78, 0.112945676
  %v80 = vmul.f32 %v62, %v79
  %v81 = vadd.f32 %v80, 0.4994258
  %v82 = vmul.f32 %v62, %v81
  %v83 = vadd.f32 %v82, 1.0
  %v84 = vrcp.pop %v83
  %v85 = vmul.f32 %v83, %v84
  %v86 = vsub.f32 1.0, %v85
  %v87 = vmul.f32 %v84, %v86
  %v88 = vadd.f32 %v84, %v87
  %vm89 = vweird.f32 %v83
  %vm90 = vweird.f32 %v84
  %vm91 = vmor %vm89, %vm90
  %v92 = vsel %vm91, %v84, %v88
  %v93 = vand.u32 2147483647, %v83
  %vm94 = vcmp.eq.f32.partialorder %v93, 8.507059e+37
  %v95 = vand.u32 %v83, 2147483648
  %v96 = vor.u32 1.1754944e-38, %v95
  %v97 = vsel %vm94, %v96, %v92
  %v98 = vmul.f32 %v73, %v97
  %v99 = vmin.f32 %v98, 1.0
  %v100 = vmax.f32 %v99, -1.0
  %v101 = vadd.f32 %v100, 1.0
  %v102 = vmul.f32 %v59, %v101
  %v103 = vld [vmem:[%s3] sm:$0xff]
  %v104 = vld [vmem:[%s3 + $0x8] sm:$0xff]
  %v105 = vld [vmem:[%s3 + $0x10] sm:$0xff]
  %v106 = vld [vmem:[%s3 + $0x18] sm:$0xff]
  %v107 = vld [vmem:[%s3 + $0x20] sm:$0xff]
  %v108 = vld [vmem:[%s3 + $0x28] sm:$0xff]
  %v109 = vld [vmem:[%s3 + $0x30] sm:$0xff]
  %v110 = vld [vmem:[%s3 + $0x38] sm:$0xff]
  %v111 = vld [vmem:[%s4] sm:$0x1]
  %v113 = vperm.slane %v111, 0
  %vm115 = vcmask 523264
  %v117 = vsel %vm115, %v102, 0
  %119 = vmatpush.msra.mxu0 0.0
  %120 = vmatpush.msra.mxu0 0.0
  %121 = vmatpush.msra.mxu0 0.0
  %122 = vmatpush.msra.mxu0 0.0
  %123 = vmatpush.msra.mxu0 0.0
  %124 = vmatpush.msra.mxu0 0.0
  %125 = vmatpush.msra.mxu0 0.0
  %126 = vmatpush.msra.mxu0 0.0
  %127 = vmatpush.msra.mxu0 %v110
  %128 = vmatpush.msra.mxu0 %v109
  %129 = vmatpush.msra.mxu0 %v108
  %130 = vmatpush.msra.mxu0 %v107
  %131 = vmatpush.msra.mxu0 %v106
  %132 = vmatpush.msra.mxu0 %v105
  %133 = vmatpush.msra.mxu0 %v104
  %134 = vmatpush.msra.mxu0 %v103
  %135 = vmatmul.f32.gmra.mxu0 %v117
  %v136 = vpop.f32.mrf.mxu0
  %v137 = vadd.f32 %v113, %v136
  %138 = vdwg.mxu0
  %v139 = vmul.f32 %v137, 0.5
  %v140 = vmul.f32 %v137, 0.70710677
  %v141 = vmul.f32 %v140, %v140
  %v142 = vmin.f32 16.0, %v141
  %v143 = vmul.f32 %v142, 2.1237322e-06
  %v144 = vadd.f32 %v143, 0.00028619796
  %v145 = vmul.f32 %v142, %v144
  %v146 = vadd.f32 %v145, 0.0036580483
  %v147 = vmul.f32 %v142, %v146
  %v148 = vadd.f32 %v147, 0.05243302
  %v149 = vmul.f32 %v142, %v148
  %v150 = vadd.f32 %v149, 0.18741608
  %v151 = vmul.f32 %v142, %v150
  %v152 = vadd.f32 %v151, 1.1283791
  %v153 = vmul.f32 %v140, %v152
  %v154 = vmul.f32 %v142, 3.8918573e-05
  %v155 = vadd.f32 %v154, 0.001143296
  %v156 = vmul.f32 %v142, %v155
  %v157 = vadd.f32 %v156, 0.014752088
  %v158 = vmul.f32 %v142, %v157
  %v159 = vadd.f32 %v158, 0.112945676
  %v160 = vmul.f32 %v142, %v159
  %v161 = vadd.f32 %v160, 0.4994258
  %v162 = vmul.f32 %v142, %v161
  %v163 = vadd.f32 %v162, 1.0
  %v164 = vrcp.pop %v163
  %v165 = vmul.f32 %v163, %v164
  %v166 = vsub.f32 1.0, %v165
  %v167 = vmul.f32 %v164, %v166
  %v168 = vadd.f32 %v164, %v167
  %vm169 = vweird.f32 %v163
  %vm170 = vweird.f32 %v164
  %vm171 = vmor %vm169, %vm170
  %v172 = vsel %vm171, %v164, %v168
  %v173 = vand.u32 2147483647, %v163
  %vm174 = vcmp.eq.f32.partialorder %v173, 8.507059e+37
  %v175 = vand.u32 %v163, 2147483648
  %v176 = vor.u32 1.1754944e-38, %v175
  %v177 = vsel %vm174, %v176, %v172
  %v178 = vmul.f32 %v153, %v177
  %v179 = vmin.f32 %v178, 1.0
  %v180 = vmax.f32 %v179, -1.0
  %v181 = vadd.f32 %v180, 1.0
  %v182 = vmul.f32 %v139, %v181
  %v183 = vld [vmem:[%s5] sm:$0xff]
  %v184 = vld [vmem:[%s5 + $0x8] sm:$0xff]
  %v185 = vld [vmem:[%s5 + $0x10] sm:$0xff]
  %v186 = vld [vmem:[%s5 + $0x18] sm:$0xff]
  %v187 = vld [vmem:[%s6] sm:$0x1]
  %v189 = vperm.slane %v187, 0
  %v192 = vsel %vm35, %v182, 0
  %194 = vmatpush.msra.mxu0 0.0
  %195 = vmatpush.msra.mxu0 0.0
  %196 = vmatpush.msra.mxu0 0.0
  %197 = vmatpush.msra.mxu0 0.0
  %198 = vmatpush.msra.mxu0 0.0
  %199 = vmatpush.msra.mxu0 0.0
  %200 = vmatpush.msra.mxu0 0.0
  %201 = vmatpush.msra.mxu0 0.0
  %202 = vmatpush.msra.mxu0 0.0
  %203 = vmatpush.msra.mxu0 0.0
  %204 = vmatpush.msra.mxu0 0.0
  %205 = vmatpush.msra.mxu0 0.0
  %206 = vmatpush.msra.mxu0 %v186
  %207 = vmatpush.msra.mxu0 %v185
  %208 = vmatpush.msra.mxu0 %v184
  %209 = vmatpush.msra.mxu0 %v183
  %210 = vmatmul.f32.gmra.mxu0 %v192
  %v211 = vpop.f32.mrf.mxu0
  %v212 = vadd.f32 %v189, %v211
  %213 = vdwg.mxu0
  %v214 = vmax.f32 %v212, 0.0
  %vm215 = vcmask 23552
  %216 = vst.msk [vmem:[%s7] sm:$0xff] %vm215, %v214
  // Predicated region
  $region30: #{regressor_forward.1} parent=0 // pred_check
    _
  $region31: #{regressor_forward.1} parent=0 // pred_check_branch
    %218 = sbr.rel (0) target = $region33
  $region32: #{regressor_forward.1} parent=0 // pred_region
    _
  $region33: #{regressor_forward.1} parent=0 // pred_fallthru
    _
  // Predicated region
  $region34: #{regressor_forward.1} parent=0 // pred_check
    _
  $region35: #{regressor_forward.1} parent=0 // pred_check_branch
    %220 = sbr.rel (0) target = $region37
  $region36: #{regressor_forward.1} parent=0 // pred_region
    _
  $region37: #{regressor_forward.1} parent=0 // pred_fallthru
    _

</llo_original>
